<compile_context>
chip_gen: v7x
topology: tpu7x:2x2x1
jax: 0.10.0
libtpu: 0.0.40
codegen_flags: <defaults>
</compile_context>

<pallas_src>
import math
from functools import partial

import numpy as np
import jax
import jax.numpy as jnp
from jax.experimental import pallas as pl
from jax.experimental.pallas import tpu as pltpu

# 32x32 sign/index table from the reference implementation.
kernel_list = [[1, 2, 3, 4, 5, 6, 7, 8, 9, 10, 11, 12, 13, 14, 15, 16, 17, 18, 19, 20, 21, 22, 23, 24, 25, 26, 27, 28, 29, 30, 31, 32], [2, -1, 4, -3, 6, -5, -8, 7, 10, -9, -12, 11, -14, 13, 16, -15, 18, -17, -20, 19, -22, 21, 24, -23, -26, 25, 28, -27, 30, -29, -32, 31], [3, -4, -1, 2, 7, 8, -5, -6, 11, 12, -9, -10, -15, -16, 13, 14, 19, 20, -17, -18, -23, -24, 21, 22, -27, -28, 25, 26, 31, 32, -29, -30], [4, 3, -2, -1, 8, -7, 6, -5, 12, -11, 10, -9, -16, 15, -14, 13, 20, -19, 18, -17, -24, 23, -22, 21, -28, 27, -26, 25, 32, -31, 30, -29], [5, -6, -7, -8, -1, 2, 3, 4, 13, 14, 15, 16, -9, -10, -11, -12, 21, 22, 23, 24, -17, -18, -19, -20, -29, -30, -31, -32, 25, 26, 27, 28], [6, 5, -8, 7, -2, -1, -4, 3, 14, -13, 16, -15, 10, -9, 12, -11, 22, -21, 24, -23, 18, -17, 20, -19, -30, 29, -32, 31, -26, 25, -28, 27], [7, 8, 5, -6, -3, 4, -1, -2, 15, -16, -13, 14, 11, -12, -9, 10, 23, -24, -21, 22, 19, -20, -17, 18, -31, 32, 29, -30, -27, 28, 25, -26], [8, -7, 6, 5, -4, -3, 2, -1, 16, 15, -14, -13, 12, 11, -10, -9, 24, 23, -22, -21, 20, 19, -18, -17, -32, -31, 30, 29, -28, -27, 26, 25], [9, -10, -11, -12, -13, -14, -15, -16, -1, 2, 3, 4, 5, 6, 7, 8, 25, 26, 27, 28, 29, 30, 31, 32, -17, -18, -19, -20, -21, -22, -23, -24], [10, 9, -12, 11, -14, 13, 16, -15, -2, -1, -4, 3, -6, 5, 8, -7, 26, -25, 28, -27, 30, -29, -32, 31, 18, -17, 20, -19, 22, -21, -24, 23], [11, 12, 9, -10, -15, -16, 13, 14, -3, 4, -1, -2, -7, -8, 5, 6, 27, -28, -25, 26, 31, 32, -29, -30, 19, -20, -17, 18, 23, 24, -21, -22], [12, -11, 10, 9, -16, 15, -14, 13, -4, -3, 2, -1, -8, 7, -6, 5, 28, 27, -26, -25, 32, -31, 30, -29, 20, 19, -18, -17, 24, -23, 22, -21], [13, 14, 15, 16, 9, -10, -11, -12, -5, 6, 7, 8, -1, -2, -3, -4, 29, -30, -31, -32, -25, 26, 27, 28, 21, -22, -23, -24, -17, 18, 19, 20], [14, -13, 16, -15, 10, 9, 12, -11, -6, -5, 8, -7, 2, -1, 4, -3, 30, 29, -32, 31, -26, -25, -28, 27, 22, 21, -24, 23, -18, -17, -20, 19], [15, -16, -13, 14, 11, -12, 9, 10, -7, -8, -5, 6, 3, -4, -1, 2, 31, 32, 29, -30, -27, 28, -25, -26, 23, 24, 21, -22, -19, 20, -17, -18], [16, 15, -14, -13, 12, 11, -10, 9, -8, 7, -6, -5, 4, 3, -2, -1, 32, -31, 30, 29, -28, -27, 26, -25, 24, -23, 22, 21, -20, -19, 18, -17], [17, -18, -19, -20, -21, -22, -23, -24, -25, -26, -27, -28, -29, -30, -31, -32, -1, 2, 3, 4, 5, 6, 7, 8, 9, 10, 11, 12, 13, 14, 15, 16], [18, 17, -20, 19, -22, 21, 24, -23, -26, 25, 28, -27, 30, -29, -32, 31, -2, -1, -4, 3, -6, 5, 8, -7, -10, 9, 12, -11, 14, -13, -16, 15], [19, 20, 17, -18, -23, -24, 21, 22, -27, -28, 25, 26, 31, 32, -29, -30, -3, 4, -1, -2, -7, -8, 5, 6, -11, -12, 9, 10, 15, 16, -13, -14], [20, -19, 18, 17, -24, 23, -22, 21, -28, 27, -26, 25, 32, -31, 30, -29, -4, -3, 2, -1, -8, 7, -6, 5, -12, 11, -10, 9, 16, -15, 14, -13], [21, 22, 23, 24, 17, -18, -19, -20, -29, -30, -31, -32, 25, 26, 27, 28, -5, 6, 7, 8, -1, -2, -3, -4, -13, -14, -15, -16, 9, 10, 11, 12], [22, -21, 24, -23, 18, 17, 20, -19, -30, 29, -32, 31, -26, 25, -28, 27, -6, -5, 8, -7, 2, -1, 4, -3, -14, 13, -16, 15, -10, 9, -12, 11], [23, -24, -21, 22, 19, -20, 17, 18, -31, 32, 29, -30, -27, 28, 25, -26, -7, -8, -5, 6, 3, -4, -1, 2, -15, 16, 13, -14, -11, 12, 9, -10], [24, 23, -22, -21, 20, 19, -18, 17, -32, -31, 30, 29, -28, -27, 26, 25, -8, 7, -6, -5, 4, 3, -2, -1, -16, -15, 14, 13, -12, -11, 10, 9], [25, 26, 27, 28, 29, 30, 31, 32, 17, -18, -19, -20, -21, -22, -23, -24, -9, 10, 11, 12, 13, 14, 15, 16, -1, -2, -3, -4, -5, -6, -7, -8], [26, -25, 28, -27, 30, -29, -32, 31, 18, 17, 20, -19, 22, -21, -24, 23, -10, -9, 12, -11, 14, -13, -16, 15, 2, -1, 4, -3, 6, -5, -8, 7], [27, -28, -25, 26, 31, 32, -29, -30, 19, -20, 17, 18, 23, 24, -21, -22, -11, -12, -9, 10, 15, 16, -13, -14, 3, -4, -1, 2, 7, 8, -5, -6], [28, 27, -26, -25, 32, -31, 30, -29, 20, 19, -18, 17, 24, -23, 22, -21, -12, 11, -10, -9, 16, -15, 14, -13, 4, 3, -2, -1, 8, -7, 6, -5], [29, -30, -31, -32, -25, 26, 27, 28, 21, -22, -23, -24, 17, 18, 19, 20, -13, -14, -15, -16, -9, 10, 11, 12, 5, -6, -7, -8, -1, 2, 3, 4], [30, 29, -32, 31, -26, -25, -28, 27, 22, 21, -24, 23, -18, 17, -20, 19, -14, 13, -16, 15, -10, -9, -12, 11, 6, 5, -8, 7, -2, -1, -4, 3], [31, 32, 29, -30, -27, 28, -25, -26, 23, 24, 21, -22, -19, 20, 17, -18, -15, 16, 13, -14, -11, 12, -9, -10, 7, 8, 5, -6, -3, 4, -1, -2], [32, -31, 30, 29, -28, -27, 26, -25, 24, -23, 22, 21, -20, -19, 18, 17, -16, -15, 14, 13, -12, -11, 10, -9, 8, -7, 6, 5, -4, -3, 2, -1]]


def make_quaternion_mul(weight):
    """Hamilton construction as one gather + sign multiply (parameter setup, plain JAX).

    hamilton[j*d + r, i*dim + c] = sign(kernel_list[j][i]) * weight[r, (|k|-1)*dim + c]
    """
    d_rows = weight.shape[0]
    dim = weight.shape[1] // 32
    tbl = jnp.asarray(kernel_list, dtype=jnp.int32)            # tbl[j, i]
    idx = jnp.abs(tbl) - 1                                     # (32, 32)
    sgn = jnp.sign(tbl).astype(weight.dtype)                   # (32, 32)
    w = weight.reshape(d_rows, 32, dim)                        # w[r, g, c]
    h = jnp.take(w, idx, axis=1)                               # (d_rows, 32_j, 32_i, dim)
    h = h * sgn[None, :, :, None]
    return h.transpose(1, 0, 2, 3).reshape(32 * d_rows, 32 * dim)


def _make_quaternion_mul_ref_np(weight_np):
    """Direct numpy transliteration of the PyTorch reference (used only for checking)."""
    dim = weight_np.shape[1] // 32
    dim_list = [weight_np[:, g * dim:(g + 1) * dim] for g in range(32)]
    cols = []
    for i in range(32):
        rows = []
        for j in range(32):
            k = kernel_list[j][i]
            rows.append(dim_list[k - 1] if k > 0 else -dim_list[-k - 1])
        cols.append(np.concatenate(rows, axis=0))
    return np.concatenate(cols, axis=1)


# ---------------------------------------------------------------------------
# Tiling helpers
# ---------------------------------------------------------------------------
def _round_up(x, m):
    return ((x + m - 1) // m) * m


def _node_block(n):
    """Row/col blocking granularity for the node dimension.

    Multiple of 128, <= 512, keeping padding waste modest and preferring >= 2 row
    blocks so the "parallel" i axis can shard across both v7x TensorCores.
    """
    if n <= 128:
        return 128
    nb = 512
    while nb > 128 and (_round_up(n, nb) - n) > max(n // 8, 128):
        nb //= 2
    while nb > 128 and _round_up(n, nb) // nb < 2:
        nb //= 2
    return nb


def _dividing_tile(dim, cap, unit):
    """Largest multiple of `unit` that divides `dim` and is <= cap.

    `dim` is expected to already be a multiple of `unit` (pre-padded)."""
    t = min(cap, dim)
    t -= t % unit
    while t > unit and dim % t != 0:
        t -= unit
    return max(t, unit)


# ---------------------------------------------------------------------------
# Generic tiled matmul kernel: C[M,N] = A[M,K] @ B[K,N], f32 MXU accumulation.
# Grid = (M/tm, N/tn, K/tk); reduction axis last ("arbitrary"), row/col axes
# "parallel" (megacore sharding on v7x).  Operand tiles are cast to compute_dtype
# in-kernel (VPU, after the DMA) so f32 operands can be streamed without a
# standalone cast pass.  f32 outputs accumulate directly into the k-invariant
# output block; bf16 outputs use an f32 VMEM scratch accumulator + final cast.
# ---------------------------------------------------------------------------
def _mm_kernel_inplace(compute_dtype):
    def kernel(a_ref, b_ref, o_ref):
        @pl.when(pl.program_id(2) == 0)
        def _init():
            o_ref[...] = jnp.zeros_like(o_ref)

        o_ref[...] += jnp.dot(a_ref[...].astype(compute_dtype),
                              b_ref[...].astype(compute_dtype),
                              preferred_element_type=jnp.float32)
    return kernel


def _mm_kernel_scratch(compute_dtype):
    def kernel(a_ref, b_ref, o_ref, acc_ref):
        @pl.when(pl.program_id(2) == 0)
        def _init():
            acc_ref[...] = jnp.zeros_like(acc_ref)

        acc_ref[...] += jnp.dot(a_ref[...].astype(compute_dtype),
                                b_ref[...].astype(compute_dtype),
                                preferred_element_type=jnp.float32)

        @pl.when(pl.program_id(2) == pl.num_programs(2) - 1)
        def _store():
            o_ref[...] = acc_ref[...].astype(o_ref.dtype)
    return kernel


def _pallas_matmul(a, b, *, out_dtype=jnp.float32, compute_dtype=jnp.bfloat16,
                   tm=None, tn=None, tk=None):
    """C = A @ B.  Any dim not divisible by its tile is zero-padded here and the
    result sliced back (safety net only; the layer wrapper pre-pads so this is a
    no-op on the hot path and adj is never re-padded per step)."""
    m, k = a.shape
    k2, n = b.shape
    assert k == k2
    if tm is None:
        tm = min(512, _round_up(m, 8))
    if tn is None:
        tn = min(256, _round_up(n, 128))
    if tk is None:
        tk = min(1024, _round_up(k, 128))
    mp, kp, np_ = _round_up(m, tm), _round_up(k, tk), _round_up(n, tn)
    if (mp, kp) != (m, k):
        a = jnp.pad(a, ((0, mp - m), (0, kp - k)))
    if (kp, np_) != (k, n):
        b = jnp.pad(b, ((0, kp - k), (0, np_ - n)))
    grid = (mp // tm, np_ // tn, kp // tk)

    out_dtype = jnp.dtype(out_dtype)
    accumulate_in_out = out_dtype == jnp.dtype(jnp.float32)
    kernel = (_mm_kernel_inplace(compute_dtype) if accumulate_in_out
              else _mm_kernel_scratch(compute_dtype))
    scratch = [] if accumulate_in_out else [pltpu.VMEM((tm, tn), jnp.float32)]

    # VMEM limit derived from the actual (double-buffered) tile footprint, capped
    # at 48 MiB so large tiles still leave headroom inside v7x's 64 MiB VMEM.
    bytes_a = a.dtype.itemsize
    bytes_b = b.dtype.itemsize
    tile_bytes = (2 * (tm * tk * bytes_a + tk * tn * bytes_b)
                  + 2 * tm * tn * out_dtype.itemsize
                  + (0 if accumulate_in_out else tm * tn * 4))
    vmem_limit = int(min(max(tile_bytes * 3 // 2 + (4 << 20), 24 << 20), 48 << 20))

    cost = pl.CostEstimate(
        flops=2 * mp * np_ * kp,
        transcendentals=0,
        bytes_accessed=(mp * kp * bytes_a * (np_ // tn)
                        + kp * np_ * bytes_b * (mp // tm)
                        + mp * np_ * out_dtype.itemsize))

    out = pl.pallas_call(
        kernel,
        out_shape=jax.ShapeDtypeStruct((mp, np_), out_dtype),
        grid_spec=pltpu.PrefetchScalarGridSpec(
            num_scalar_prefetch=0,
            grid=grid,
            in_specs=[
                pl.BlockSpec((tm, tk), lambda i, j, l: (i, l)),   # A (adj) streamed
                pl.BlockSpec((tk, tn), lambda i, j, l: (l, j)),   # B tiles
            ],
            out_specs=pl.BlockSpec((tm, tn), lambda i, j, l: (i, j)),
            scratch_shapes=scratch,
        ),
        compiler_params=pltpu.CompilerParams(
            dimension_semantics=("parallel", "parallel", "arbitrary"),
            vmem_limit_bytes=vmem_limit,
        ),
        cost_estimate=cost,
    )(a, b)
    return out[:m, :n]


def sqgnn_layer(inputs, adj, weight, step_k=1, compute_dtype=jnp.bfloat16):
    """inputs: (N, 32*(in_features//4)), adj: (N, N) dense row-normalized,
    weight: (in_features//4, out_features).

    Computes adj^max(1,step_k) @ inputs @ hamilton(weight).  bf16 MXU operands
    (f32 accumulation) by default; pass compute_dtype=jnp.float32 for an f32 path.
    Note bf16 quantization of adj / intermediates compounds over step_k (f32
    accumulation bounds it to ~0.5-1% relative per the review).
    """
    hamilton = make_quaternion_mul(weight)                     # (32*d, out_features)
    n, feat = inputs.shape
    out = hamilton.shape[1]
    assert feat == hamilton.shape[0], "input feature dim must equal 32*(in_features//4)"
    n_adj = max(1, step_k)                                     # torch forward applies adj >= once
    compute_dtype = jnp.dtype(compute_dtype)

    # ---- one-time padding: feature/output dims to lane-dense 128 multiples, node
    # dim to the adjacency tile (so blocks divide exactly: no masked stores, no
    # per-step re-padding, no full-array fallback for ragged N). ----
    out_p = _round_up(out, 128)
    feat_p = _round_up(feat, 128)
    nb = _node_block(n)
    n_p = _round_up(n, nb)

    ham_p = hamilton
    if (feat_p, out_p) != (feat, out):
        ham_p = jnp.pad(hamilton, ((0, feat_p - feat), (0, out_p - out)))
    x_p = inputs
    if (n_p, feat_p) != (n, feat):
        x_p = jnp.pad(inputs, ((0, n_p - n), (0, feat_p - feat)))

    # A standalone adj->bf16 cast pass only pays off when adj is streamed >= 3 times;
    # for step_k <= 2 stream f32 adj and cast the tile in-kernel after the DMA.
    if compute_dtype != jnp.dtype(jnp.float32) and n_adj >= 3:
        adj_c = adj.astype(compute_dtype)
    else:
        adj_c = adj
    adj_p = adj_c if n_p == n else jnp.pad(adj_c, ((0, n_p - n), (0, n_p - n)))

    # Tiles: big streamed A tiles for the HBM-bound adjacency chain, exact divisors
    # of the (padded) dims.
    tm_n = nb                                      # row tile (>=2 blocks when N allows)
    tk_n = _dividing_tile(n_p, 2048, nb)           # adjacency reduction tile
    tk_f = _dividing_tile(feat_p, 1024, 128)       # hamilton-matmul reduction tile
    tn_o = _dividing_tile(out_p, 512, 128)         # output-width tile (lane-dense)
    tn_f = _dividing_tile(feat_p, 512, 128)

    # TODO(synk): for small/medium N, fuse the whole adj^k chain into one kernel with
    # the (N, out_p) intermediate resident in VMEM (ping-pong buffers + emit_pipeline).
    if out_p <= feat_p:
        # Associativity reorder: adj^k (x @ H) -- the adjacency chain runs on the
        # narrow (N, out_p) intermediate.  Intermediates are emitted in compute_dtype
        # directly by the kernel; only the last step produces f32.
        t = _pallas_matmul(x_p, ham_p, out_dtype=compute_dtype,
                           compute_dtype=compute_dtype, tm=tm_n, tn=tn_o, tk=tk_f)
        for step in range(n_adj):
            last = step == n_adj - 1
            t = _pallas_matmul(adj_p, t,
                               out_dtype=jnp.float32 if last else compute_dtype,
                               compute_dtype=compute_dtype,
                               tm=tm_n, tn=tn_o, tk=tk_n)
        return t[:n, :out]
    else:
        # Original op order is cheaper when out_features > feature dim.
        t = x_p
        for _ in range(n_adj):
            t = _pallas_matmul(adj_p, t, out_dtype=compute_dtype,
                               compute_dtype=compute_dtype,
                               tm=tm_n, tn=tn_f, tk=tk_n)
        y = _pallas_matmul(t, ham_p, out_dtype=jnp.float32,
                           compute_dtype=compute_dtype, tm=tm_n, tn=tn_o, tk=tk_f)
        return y[:n, :out]


if __name__ == "__main__":
    # Module config (matches SQGNN_layer.__init__): weight is (in_features//4, out_features),
    # out_features divisible by 32, input feature dim = 32 * (in_features//4).
    in_features = 16          # -> weight rows d = 4
    out_features = 32         # -> hamilton (128, 32)
    step_k = 2
    n_nodes = 8
    d = in_features // 4
    feat_dim = 32 * d         # 128

    key = jax.random.PRNGKey(0)
    k_w, k_x, k_a = jax.random.split(key, 3)

    stdv = math.sqrt(6.0 / (d + out_features))
    weight = jax.random.uniform(k_w, (d, out_features), jnp.float32,
                                minval=-stdv, maxval=stdv)
    x = jax.random.normal(k_x, (n_nodes, feat_dim), jnp.float32)
    adj = jax.random.uniform(k_a, (n_nodes, n_nodes), jnp.float32)
    adj = adj / jnp.sum(adj, axis=1, keepdims=True)    # row-normalized dense adjacency

    # --- hamilton construction check vs. the literal PyTorch-style build ---
    ham = make_quaternion_mul(weight)
    ham_ref = _make_quaternion_mul_ref_np(np.asarray(weight))
    assert np.allclose(np.asarray(ham), ham_ref, atol=1e-6)

    # --- reference forward (PyTorch op order, f32) ---
    ref = x
    for _ in range(max(1, step_k)):
        ref = adj @ ref
    ref = ref @ ham

    # Exact-semantics check with the f32 compute path (only op / reduction order differs).
    layer_f32 = jax.jit(partial(sqgnn_layer, step_k=step_k, compute_dtype=jnp.float32))
    out_f32 = jax.block_until_ready(layer_f32(x, adj, weight))
    assert out_f32.shape == (n_nodes, out_features)
    assert jnp.allclose(out_f32, ref, atol=1e-4, rtol=1e-4)

    # Default fast path: bf16 operands, f32 MXU accumulation (looser tolerance).
    layer_bf16 = jax.jit(partial(sqgnn_layer, step_k=step_k))
    out = jax.block_until_ready(layer_bf16(x, adj, weight))
    assert out.shape == (n_nodes, out_features)
    assert jnp.allclose(out, ref, atol=2e-1, rtol=5e-2)

    print("KERNEL_OK")
</pallas_src>

<mosaic_0001>
module attributes {stable_mosaic.version = 11 : i64} {
  func.func @kernel(%arg0: i32, %arg1: i32, %arg2: i32, %arg3: memref<128x128xf32, #tpu.memory_space<vmem>>, %arg4: memref<128x128xf32, #tpu.memory_space<vmem>>, %arg5: memref<128x128xf32, #tpu.memory_space<vmem>>) attributes {dimension_semantics = [#tpu.dimension_semantics<parallel>, #tpu.dimension_semantics<parallel>, #tpu.dimension_semantics<arbitrary>], iteration_bounds = array<i64: 1, 1, 1>, scalar_prefetch = 0 : i64, scratch_operands = 0 : i64, tpu.core_type = #tpu.core_type<tc>, window_params = [{transform_indices = @transform_0, window_bounds = array<i64: 128, 128>}, {transform_indices = @transform_1, window_bounds = array<i64: 128, 128>}, {transform_indices = @transform_2, window_bounds = array<i64: 128, 128>}]} {
    %c0_i32 = arith.constant 0 : i32
    %0 = arith.cmpi eq, %arg2, %c0_i32 : i32
    %1 = arith.extui %0 : i1 to i32
    %c0_i32_0 = arith.constant 0 : i32
    %2 = arith.cmpi ne, %1, %c0_i32_0 : i32
    scf.if %2 {
      %cst_8 = arith.constant 0.000000e+00 : f32
      %9 = vector.broadcast %cst_8 : f32 to vector<128x128xf32>
      %c0_9 = arith.constant 0 : index
      %c0_10 = arith.constant 0 : index
      %10 = vector.load %arg5[%c0_9, %c0_10] : memref<128x128xf32, #tpu.memory_space<vmem>>, vector<128x128xf32>
      tpu.vector_store %arg5[%c0_9, %c0_10], %9 {strides = array<i32>} : memref<128x128xf32, #tpu.memory_space<vmem>>, vector<128x128xf32>,
    } else {
    }
    %c0 = arith.constant 0 : index
    %c0_1 = arith.constant 0 : index
    %3 = vector.load %arg5[%c0, %c0_1] : memref<128x128xf32, #tpu.memory_space<vmem>>, vector<128x128xf32>
    %c0_2 = arith.constant 0 : index
    %c0_3 = arith.constant 0 : index
    %4 = vector.load %arg3[%c0_2, %c0_3] : memref<128x128xf32, #tpu.memory_space<vmem>>, vector<128x128xf32>
    %c0_4 = arith.constant 0 : index
    %c0_5 = arith.constant 0 : index
    %5 = vector.load %arg4[%c0_4, %c0_5] : memref<128x128xf32, #tpu.memory_space<vmem>>, vector<128x128xf32>
    %cst = arith.constant dense<0.000000e+00> : vector<128x128xf32>
    %6 = tpu.matmul %4, %5, %cst {dimension_numbers = #tpu.dot_dimension_numbers<[1], [0], [0], [1], [0, 0, 1, 1], [], []>} : vector<128x128xf32>, vector<128x128xf32>, vector<128x128xf32> -> vector<128x128xf32>
    %7 = arith.addf %3, %6 : vector<128x128xf32>
    %c0_6 = arith.constant 0 : index
    %c0_7 = arith.constant 0 : index
    %8 = vector.load %arg5[%c0_6, %c0_7] : memref<128x128xf32, #tpu.memory_space<vmem>>, vector<128x128xf32>
    tpu.vector_store %arg5[%c0_6, %c0_7], %7 {strides = array<i32>} : memref<128x128xf32, #tpu.memory_space<vmem>>, vector<128x128xf32>,
    return
  }
  func.func @transform_0(%arg0: i32, %arg1: i32, %arg2: i32) -> (i32, i32) {
    %c0_i32 = arith.constant 0 : i32
    return %arg0, %arg2 : i32, i32
  }
  func.func @transform_1(%arg0: i32, %arg1: i32, %arg2: i32) -> (i32, i32) {
    %c0_i32 = arith.constant 0 : i32
    return %arg2, %arg1 : i32, i32
  }
  func.func @transform_2(%arg0: i32, %arg1: i32, %arg2: i32) -> (i32, i32) {
    %c0_i32 = arith.constant 0 : i32
    return %arg0, %arg1 : i32, i32
  }
}

</mosaic_0001>

<llo_original>
// kernel: sqgnn_layer.3
$region0: #{sqgnn_layer.3}
  #allocation0 [shape = 'u32[]', space=smem, size = 0x4, offset = 0x4, fixed_abs, tag = 'smem constant byte address 0x4 - core index']
  #allocation1 [shape = 'u32[144,128]{1,0:T(1,128)}', space=vmem, size = 0x12000, scoped, tag = 'internal scratch']
  %s0 = inlined_call_operand.vmem [shape: f32[128,128], index: 0, kind: input, shape index: {}]
  %s1 = inlined_call_operand.vmem [shape: f32[128,128], index: 1, kind: input, shape index: {}]
  %s2 = inlined_call_operand.vmem [shape: f32[128,128], index: 2, kind: output, shape index: {}]
  %s3 = sld [smem:[#allocation0]]
  $region22: #{sqgnn_layer.3} parent=0
    _
  %s5 = ssub.s32 1, %s3
  %s6 = scalar_select 0, %s5, %s3
  // Predicated region
  $region2: #{sqgnn_layer.3} parent=0 // pred_check
    _
  $region3: #{sqgnn_layer.3} parent=0 // pred_check_branch
    %8 = sbr.rel (0) target = $region5
  $region4: #{sqgnn_layer.3} parent=0 // pred_region
    _
  $region5: #{sqgnn_layer.3} parent=0 // pred_fallthru
    _
  // Predicated region
  $region6: #{sqgnn_layer.3} parent=0 // pred_check
    _
  $region7: #{sqgnn_layer.3} parent=0 // pred_check_branch
    %10 = sbr.rel (0) target = $region9
  $region8: #{sqgnn_layer.3} parent=0 // pred_region
    _
  $region9: #{sqgnn_layer.3} parent=0 // pred_fallthru
    _
  %p11 = scmp.eq.s32.totalorder 0, 0
  // Predicated region
  $region10: #{sqgnn_layer.3} parent=0 // pred_check
    %p12 = pneg %p11
  $region11: #{sqgnn_layer.3} parent=0 // pred_check_branch
    %14 = sbr.rel (%p12) target = $region13
  $region12: #{sqgnn_layer.3} parent=0 // pred_region
    %15 = vst [vmem:[%s2] sm:$0xff] 0.0
    %16 = vst [vmem:[%s2 + $0x8] sm:$0xff] 0.0
    %17 = vst [vmem:[%s2 + $0x10] sm:$0xff] 0.0
    %18 = vst [vmem:[%s2 + $0x18] sm:$0xff] 0.0
    %19 = vst [vmem:[%s2 + $0x20] sm:$0xff] 0.0
    %20 = vst [vmem:[%s2 + $0x28] sm:$0xff] 0.0
    %21 = vst [vmem:[%s2 + $0x30] sm:$0xff] 0.0
    %22 = vst [vmem:[%s2 + $0x38] sm:$0xff] 0.0
    %23 = vst [vmem:[%s2 + $0x40] sm:$0xff] 0.0
    %24 = vst [vmem:[%s2 + $0x48] sm:$0xff] 0.0
    %25 = vst [vmem:[%s2 + $0x50] sm:$0xff] 0.0
    %26 = vst [vmem:[%s2 + $0x58] sm:$0xff] 0.0
    %27 = vst [vmem:[%s2 + $0x60] sm:$0xff] 0.0
    %28 = vst [vmem:[%s2 + $0x68] sm:$0xff] 0.0
    %29 = vst [vmem:[%s2 + $0x70] sm:$0xff] 0.0
    %30 = vst [vmem:[%s2 + $0x78] sm:$0xff] 0.0
  $region13: #{sqgnn_layer.3} parent=0 // pred_fallthru
    _
  %v31 = vld [vmem:[%s2] sm:$0xff]
  %v32 = vld [vmem:[%s2 + $0x8] sm:$0xff]
  %v33 = vld [vmem:[%s2 + $0x10] sm:$0xff]
  %v34 = vld [vmem:[%s2 + $0x18] sm:$0xff]
  %v35 = vld [vmem:[%s2 + $0x20] sm:$0xff]
  %v36 = vld [vmem:[%s2 + $0x28] sm:$0xff]
  %v37 = vld [vmem:[%s2 + $0x30] sm:$0xff]
  %v38 = vld [vmem:[%s2 + $0x38] sm:$0xff]
  %v39 = vld [vmem:[%s2 + $0x40] sm:$0xff]
  %v40 = vld [vmem:[%s2 + $0x48] sm:$0xff]
  %v41 = vld [vmem:[%s2 + $0x50] sm:$0xff]
  %v42 = vld [vmem:[%s2 + $0x58] sm:$0xff]
  %v43 = vld [vmem:[%s2 + $0x60] sm:$0xff]
  %v44 = vld [vmem:[%s2 + $0x68] sm:$0xff]
  %v45 = vld [vmem:[%s2 + $0x70] sm:$0xff]
  %v46 = vld [vmem:[%s2 + $0x78] sm:$0xff]
  %v47 = vld [vmem:[%s0] sm:$0xff]
  %v48 = vld [vmem:[%s0 + $0x8] sm:$0xff]
  %v49 = vld [vmem:[%s0 + $0x10] sm:$0xff]
  %v50 = vld [vmem:[%s0 + $0x18] sm:$0xff]
  %v51 = vld [vmem:[%s0 + $0x20] sm:$0xff]
  %v52 = vld [vmem:[%s0 + $0x28] sm:$0xff]
  %v53 = vld [vmem:[%s0 + $0x30] sm:$0xff]
  %v54 = vld [vmem:[%s0 + $0x38] sm:$0xff]
  %v55 = vld [vmem:[%s0 + $0x40] sm:$0xff]
  %v56 = vld [vmem:[%s0 + $0x48] sm:$0xff]
  %v57 = vld [vmem:[%s0 + $0x50] sm:$0xff]
  %v58 = vld [vmem:[%s0 + $0x58] sm:$0xff]
  %v59 = vld [vmem:[%s0 + $0x60] sm:$0xff]
  %v60 = vld [vmem:[%s0 + $0x68] sm:$0xff]
  %v61 = vld [vmem:[%s0 + $0x70] sm:$0xff]
  %v62 = vld [vmem:[%s0 + $0x78] sm:$0xff]
  %v63 = vld [vmem:[%s1] sm:$0xff]
  %v64 = vld [vmem:[%s1 + $0x8] sm:$0xff]
  %v65 = vld [vmem:[%s1 + $0x10] sm:$0xff]
  %v66 = vld [vmem:[%s1 + $0x18] sm:$0xff]
  %v67 = vld [vmem:[%s1 + $0x20] sm:$0xff]
  %v68 = vld [vmem:[%s1 + $0x28] sm:$0xff]
  %v69 = vld [vmem:[%s1 + $0x30] sm:$0xff]
  %v70 = vld [vmem:[%s1 + $0x38] sm:$0xff]
  %v71 = vld [vmem:[%s1 + $0x40] sm:$0xff]
  %v72 = vld [vmem:[%s1 + $0x48] sm:$0xff]
  %v73 = vld [vmem:[%s1 + $0x50] sm:$0xff]
  %v74 = vld [vmem:[%s1 + $0x58] sm:$0xff]
  %v75 = vld [vmem:[%s1 + $0x60] sm:$0xff]
  %v76 = vld [vmem:[%s1 + $0x68] sm:$0xff]
  %v77 = vld [vmem:[%s1 + $0x70] sm:$0xff]
  %v78 = vld [vmem:[%s1 + $0x78] sm:$0xff]
  %79 = vmatprep.subr.mxu0 0.0
  %80 = vmatpush1.msra.mxu0 %v63
  %81 = vmatprep.subr.mxu0 0.0
  %82 = vmatpush1.msra.mxu0 %v64
  %83 = vmatprep.subr.mxu0 0.0
  %84 = vmatpush1.msra.mxu0 %v65
  %85 = vmatprep.subr.mxu0 0.0
  %86 = vmatpush1.msra.mxu0 %v66
  %87 = vmatprep.subr.mxu0 0.0
  %88 = vmatpush1.msra.mxu0 %v67
  %89 = vmatprep.subr.mxu0 0.0
  %90 = vmatpush1.msra.mxu0 %v68
  %91 = vmatprep.subr.mxu0 0.0
  %92 = vmatpush1.msra.mxu0 %v69
  %93 = vmatprep.subr.mxu0 0.0
  %94 = vmatpush1.msra.mxu0 %v70
  %95 = vmatprep.subr.mxu0 0.0
  %96 = vmatpush1.msra.mxu0 %v71
  %97 = vmatprep.subr.mxu0 0.0
  %98 = vmatpush1.msra.mxu0 %v72
  %99 = vmatprep.subr.mxu0 0.0
  %100 = vmatpush1.msra.mxu0 %v73
  %101 = vmatprep.subr.mxu0 0.0
  %102 = vmatpush1.msra.mxu0 %v74
  %103 = vmatprep.subr.mxu0 0.0
  %104 = vmatpush1.msra.mxu0 %v75
  %105 = vmatprep.subr.mxu0 0.0
  %106 = vmatpush1.msra.mxu0 %v76
  %107 = vmatprep.subr.mxu0 0.0
  %108 = vmatpush1.msra.mxu0 %v77
  %109 = vmatprep.subr.mxu0 0.0
  %110 = vmatpush1.msra.mxu0 %v78
  %111 = vmatprep.subr.mxu0 0.0
  %112 = vmatpush1.msra.mxu0 0.0
  %113 = vmatprep.subr.mxu0 0.0
  %114 = vmatpush1.msra.mxu0 0.0
  %115 = vmatprep.subr.mxu0 0.0
  %116 = vmatpush1.msra.mxu0 0.0
  %117 = vmatprep.subr.mxu0 0.0
  %118 = vmatpush1.msra.mxu0 0.0
  %119 = vmatprep.subr.mxu0 0.0
  %120 = vmatpush1.msra.mxu0 0.0
  %121 = vmatprep.subr.mxu0 0.0
  %122 = vmatpush1.msra.mxu0 0.0
  %123 = vmatprep.subr.mxu0 0.0
  %124 = vmatpush1.msra.mxu0 0.0
  %125 = vmatprep.subr.mxu0 0.0
  %126 = vmatpush1.msra.mxu0 0.0
  %127 = vmatprep.subr.mxu0 0.0
  %128 = vmatpush1.msra.mxu0 0.0
  %129 = vmatprep.subr.mxu0 0.0
  %130 = vmatpush1.msra.mxu0 0.0
  %131 = vmatprep.subr.mxu0 0.0
  %132 = vmatpush1.msra.mxu0 0.0
  %133 = vmatprep.subr.mxu0 0.0
  %134 = vmatpush1.msra.mxu0 0.0
  %135 = vmatprep.subr.mxu0 0.0
  %136 = vmatpush1.msra.mxu0 0.0
  %137 = vmatprep.subr.mxu0 0.0
  %138 = vmatpush1.msra.mxu0 0.0
  %139 = vmatprep.subr.mxu0 0.0
  %140 = vmatpush1.msra.mxu0 0.0
  %141 = vmatprep.subr.mxu0 0.0
  %142 = vmatpush1.msra.mxu0 0.0
  %143 = vmatprep.mubr.f32.mxu0 0.0
  %144 = vmatmul.mubr.f32.gmra.mrb[0].mxu0 %v47
  %v145 = vpop.f32.mrb[0].mxu0
  %v146 = vadd.f32 0.0, %v145
  %v147 = vpop.f32.mrb[0].mxu0
  %148 = vmatprep.mubr.f32.mxu0 0.0
  %149 = vmatmul.mubr.f32.gmra.mrb[0].mxu0 %v48
  %v150 = vpop.f32.mrb[0].mxu0
  %v151 = vadd.f32 0.0, %v150
  %v152 = vpop.f32.mrb[0].mxu0
  %153 = vmatprep.mubr.f32.mxu0 0.0
  %154 = vmatmul.mubr.f32.gmra.mrb[0].mxu0 %v49
  %v155 = vpop.f32.mrb[0].mxu0
  %v156 = vadd.f32 0.0, %v155
  %v157 = vpop.f32.mrb[0].mxu0
  %158 = vmatprep.mubr.f32.mxu0 0.0
  %159 = vmatmul.mubr.f32.gmra.mrb[0].mxu0 %v50
  %v160 = vpop.f32.mrb[0].mxu0
  %v161 = vadd.f32 0.0, %v160
  %v162 = vpop.f32.mrb[0].mxu0
  %163 = vmatprep.mubr.f32.mxu0 0.0
  %164 = vmatmul.mubr.f32.gmra.mrb[0].mxu0 %v51
  %v165 = vpop.f32.mrb[0].mxu0
  %v166 = vadd.f32 0.0, %v165
  %v167 = vpop.f32.mrb[0].mxu0
  %168 = vmatprep.mubr.f32.mxu0 0.0
  %169 = vmatmul.mubr.f32.gmra.mrb[0].mxu0 %v52
  %v170 = vpop.f32.mrb[0].mxu0
  %v171 = vadd.f32 0.0, %v170
  %v172 = vpop.f32.mrb[0].mxu0
  %173 = vmatprep.mubr.f32.mxu0 0.0
  %174 = vmatmul.mubr.f32.gmra.mrb[0].mxu0 %v53
  %v175 = vpop.f32.mrb[0].mxu0
  %v176 = vadd.f32 0.0, %v175
  %v177 = vpop.f32.mrb[0].mxu0
  %178 = vmatprep.mubr.f32.mxu0 0.0
  %179 = vmatmul.mubr.f32.gmra.mrb[0].mxu0 %v54
  %v180 = vpop.f32.mrb[0].mxu0
  %v181 = vadd.f32 0.0, %v180
  %v182 = vpop.f32.mrb[0].mxu0
  %183 = vmatprep.mubr.f32.mxu0 0.0
  %184 = vmatmul.mubr.f32.gmra.mrb[0].mxu0 %v55
  %v185 = vpop.f32.mrb[0].mxu0
  %v186 = vadd.f32 0.0, %v185
  %v187 = vpop.f32.mrb[0].mxu0
  %188 = vmatprep.mubr.f32.mxu0 0.0
  %189 = vmatmul.mubr.f32.gmra.mrb[0].mxu0 %v56
  %v190 = vpop.f32.mrb[0].mxu0
  %v191 = vadd.f32 0.0, %v190
  %v192 = vpop.f32.mrb[0].mxu0
  %193 = vmatprep.mubr.f32.mxu0 0.0
  %194 = vmatmul.mubr.f32.gmra.mrb[0].mxu0 %v57
  %v195 = vpop.f32.mrb[0].mxu0
  %v196 = vadd.f32 0.0, %v195
  %v197 = vpop.f32.mrb[0].mxu0
  %198 = vmatprep.mubr.f32.mxu0 0.0
  %199 = vmatmul.mubr.f32.gmra.mrb[0].mxu0 %v58
  %v200 = vpop.f32.mrb[0].mxu0
  %v201 = vadd.f32 0.0, %v200
  %v202 = vpop.f32.mrb[0].mxu0
  %203 = vmatprep.mubr.f32.mxu0 0.0
  %204 = vmatmul.mubr.f32.gmra.mrb[0].mxu0 %v59
  %v205 = vpop.f32.mrb[0].mxu0
  %v206 = vadd.f32 0.0, %v205
  %v207 = vpop.f32.mrb[0].mxu0
  %208 = vmatprep.mubr.f32.mxu0 0.0
  %209 = vmatmul.mubr.f32.gmra.mrb[0].mxu0 %v60
  %v210 = vpop.f32.mrb[0].mxu0
  %v211 = vadd.f32 0.0, %v210
  %v212 = vpop.f32.mrb[0].mxu0
  %213 = vmatprep.mubr.f32.mxu0 0.0
  %214 = vmatmul.mubr.f32.gmra.mrb[0].mxu0 %v61
  %v215 = vpop.f32.mrb[0].mxu0
  %v216 = vadd.f32 0.0, %v215
  %v217 = vpop.f32.mrb[0].mxu0
  %218 = vmatprep.mubr.f32.mxu0 0.0
  %219 = vmatmul.mubr.f32.gmra.mrb[0].mxu0 %v62
  %v220 = vpop.f32.mrb[0].mxu0
  %v221 = vadd.f32 0.0, %v220
  %v222 = vpop.f32.mrb[0].mxu0
  %223 = vdwg.mxu0
  %v224 = vadd.f32 %v31, %v146
  %v225 = vadd.f32 %v32, %v151
  %v226 = vadd.f32 %v33, %v156
  %v227 = vadd.f32 %v34, %v161
  %v228 = vadd.f32 %v35, %v166
  %v229 = vadd.f32 %v36, %v171
  %v230 = vadd.f32 %v37, %v176
  %v231 = vadd.f32 %v38, %v181
  %v232 = vadd.f32 %v39, %v186
  %v233 = vadd.f32 %v40, %v191
  %v234 = vadd.f32 %v41, %v196
  %v235 = vadd.f32 %v42, %v201
  %v236 = vadd.f32 %v43, %v206
  %v237 = vadd.f32 %v44, %v211
  %v238 = vadd.f32 %v45, %v216
  %v239 = vadd.f32 %v46, %v221
  %240 = vst [vmem:[%s2] sm:$0xff] %v224
  %241 = vst [vmem:[%s2 + $0x8] sm:$0xff] %v225
  %242 = vst [vmem:[%s2 + $0x10] sm:$0xff] %v226
  %243 = vst [vmem:[%s2 + $0x18] sm:$0xff] %v227
  %244 = vst [vmem:[%s2 + $0x20] sm:$0xff] %v228
  %245 = vst [vmem:[%s2 + $0x28] sm:$0xff] %v229
  %246 = vst [vmem:[%s2 + $0x30] sm:$0xff] %v230
  %247 = vst [vmem:[%s2 + $0x38] sm:$0xff] %v231
  %248 = vst [vmem:[%s2 + $0x40] sm:$0xff] %v232
  %249 = vst [vmem:[%s2 + $0x48] sm:$0xff] %v233
  %250 = vst [vmem:[%s2 + $0x50] sm:$0xff] %v234
  %251 = vst [vmem:[%s2 + $0x58] sm:$0xff] %v235
  %252 = vst [vmem:[%s2 + $0x60] sm:$0xff] %v236
  %253 = vst [vmem:[%s2 + $0x68] sm:$0xff] %v237
  %254 = vst [vmem:[%s2 + $0x70] sm:$0xff] %v238
  %255 = vst [vmem:[%s2 + $0x78] sm:$0xff] %v239
  // Predicated region
  $region14: #{sqgnn_layer.3} parent=0 // pred_check
    _
  $region15: #{sqgnn_layer.3} parent=0 // pred_check_branch
    %257 = sbr.rel (0) target = $region17
  $region16: #{sqgnn_layer.3} parent=0 // pred_region
    _
  $region17: #{sqgnn_layer.3} parent=0 // pred_fallthru
    _
  // Predicated region
  $region18: #{sqgnn_layer.3} parent=0 // pred_check
    _
  $region19: #{sqgnn_layer.3} parent=0 // pred_check_branch
    %259 = sbr.rel (0) target = $region21
  $region20: #{sqgnn_layer.3} parent=0 // pred_region
    _
  $region21: #{sqgnn_layer.3} parent=0 // pred_fallthru
    _

</llo_original>
